<compile_context>
chip_gen: v7x
topology: tpu7x:2x2x1
jax: 0.10.0
libtpu: 0.0.40
codegen_flags: <defaults>
</compile_context>

<pallas_src>
import jax
import jax.numpy as jnp
from jax.experimental import pallas as pl
from jax.experimental.pallas import tpu as pltpu

IN_SIZE = 5
H1 = 6
H2 = 3
OUT = 1

K_PAD = 8      # contraction / feature-input padding (f32 sublane multiple)
F_PAD = 128    # lane padding for the feature-output dim of each layer


def ff_kernel(x_ref, w_ref, b_ref, o_ref):
    x = x_ref[...]                      # [tb, 8]   cols 0..4 real
    b = b_ref[...]                      # [8, 128]  rows 0..2 = b1, b2, b3

    # fc1 + relu: [tb,8] @ [8,128] -> [tb,128]. Zero-padded weight cols and
    # zero bias keep padded output lanes at relu(0) == 0.
    w1 = w_ref[0:K_PAD, :].astype(jnp.float32)
    h1 = jnp.dot(x, w1, preferred_element_type=jnp.float32)
    h1 = jnp.maximum(h1 + b[0:1, :], 0.0)

    # fc2 + relu: the real fc1 outputs live in lanes 0..5 of h1; lanes 6..7 are
    # exactly zero and so are rows 6..7 of packed W2, so K=8 contraction is exact.
    w2 = w_ref[K_PAD:2 * K_PAD, :].astype(jnp.float32)
    h2 = jnp.dot(h1[:, :K_PAD], w2, preferred_element_type=jnp.float32)
    h2 = jnp.maximum(h2 + b[1:2, :], 0.0)

    # fc3 + sigmoid. Full 128-lane store keeps the output lane-dense (unmasked
    # vst); only lane 0 is real, padded lanes hold sigmoid(0) = 0.5.
    w3 = w_ref[2 * K_PAD:3 * K_PAD, :].astype(jnp.float32)
    z3 = jnp.dot(h2[:, :K_PAD], w3, preferred_element_type=jnp.float32)
    o_ref[...] = jax.nn.sigmoid(z3 + b[2:3, :]).astype(o_ref.dtype)


def _round_up(n, m):
    return ((n + m - 1) // m) * m


def pack_params(params, param_dtype=jnp.float32):
    """One-time parameter packing (hoisted out of the per-call forward path).

    params holds PyTorch-layout tensors: w_i is [out, in], b_i is [out].
    param_dtype=jnp.bfloat16 halves weight DMA bytes (v6e/v7x); biases stay f32.
    """
    w = jnp.zeros((3 * K_PAD, F_PAD), param_dtype)
    w = w.at[0:IN_SIZE, 0:H1].set(params["w1"].T.astype(param_dtype))
    w = w.at[K_PAD:K_PAD + H1, 0:H2].set(params["w2"].T.astype(param_dtype))
    w = w.at[2 * K_PAD:2 * K_PAD + H2, 0:OUT].set(params["w3"].T.astype(param_dtype))

    b = jnp.zeros((8, F_PAD), jnp.float32)
    b = b.at[0, 0:H1].set(params["b1"].astype(jnp.float32))
    b = b.at[1, 0:H2].set(params["b2"].astype(jnp.float32))
    b = b.at[2, 0:OUT].set(params["b3"].astype(jnp.float32))
    return jax.device_put(w), jax.device_put(b)


@jax.jit
def ff_forward(x, w_packed, b_packed):
    """x: [B, 5] float32. Returns [B, 1] sigmoid output (matches FF.forward)."""
    B = x.shape[0]
    if B <= 256:
        tb = _round_up(max(B, 1), 8)     # single grid step
        b_pad = tb
    else:
        tb = 256                         # pipelined batch tiles
        b_pad = _round_up(B, tb)

    xp = jnp.zeros((b_pad, K_PAD), jnp.float32).at[:B, :IN_SIZE].set(
        x.astype(jnp.float32))

    out_pad = pl.pallas_call(
        ff_kernel,
        out_shape=jax.ShapeDtypeStruct((b_pad, F_PAD), jnp.float32),
        grid=(b_pad // tb,),
        in_specs=[
            pl.BlockSpec((tb, K_PAD), lambda i: (i, 0)),          # x: tiled over batch
            pl.BlockSpec((3 * K_PAD, F_PAD), lambda i: (0, 0)),   # weights: VMEM-resident
            pl.BlockSpec((8, F_PAD), lambda i: (0, 0)),           # biases: VMEM-resident
        ],
        out_specs=pl.BlockSpec((tb, F_PAD), lambda i: (i, 0)),
        compiler_params=pltpu.CompilerParams(
            dimension_semantics=("parallel",)),
    )(xp, w_packed, b_packed)

    # Only lane 0 is real; padded lanes hold sigmoid(0) = 0.5 by construction.
    return out_pad[:B, :OUT]


def init_params(key):
    """Deterministic init mimicking nn.Linear (uniform(-1/sqrt(fan_in), +))."""
    ks = jax.random.split(key, 6)

    def lin(kw, kb, fan_in, fan_out):
        bound = 1.0 / jnp.sqrt(float(fan_in))
        w = jax.random.uniform(kw, (fan_out, fan_in), jnp.float32, -bound, bound)
        b = jax.random.uniform(kb, (fan_out,), jnp.float32, -bound, bound)
        return w, b

    w1, b1 = lin(ks[0], ks[1], IN_SIZE, H1)
    w2, b2 = lin(ks[2], ks[3], H1, H2)
    w3, b3 = lin(ks[4], ks[5], H2, OUT)
    return {"w1": w1, "b1": b1, "w2": w2, "b2": b2, "w3": w3, "b3": b3}


def ff_reference(x, p):
    h1 = jnp.maximum(x @ p["w1"].T + p["b1"], 0.0)
    h2 = jnp.maximum(h1 @ p["w2"].T + p["b2"], 0.0)
    return jax.nn.sigmoid(h2 @ p["w3"].T + p["b3"])


if __name__ == "__main__":
    key = jax.random.PRNGKey(0)
    kp, kx = jax.random.split(key)
    params = init_params(kp)

    # Packing / transposing / padding of parameters happens exactly once here.
    w_packed, b_packed = pack_params(params)

    # FF.forward calls .item() on the output -> effective batch = 1.
    x1 = jax.random.normal(kx, (1, IN_SIZE), jnp.float32)
    out1 = jax.block_until_ready(ff_forward(x1, w_packed, b_packed))
    ref1 = ff_reference(x1, params)
    assert out1.shape == (1, OUT)
    assert jnp.allclose(out1, ref1, atol=1e-5, rtol=1e-5), (out1, ref1)

    # Also exercise a ragged batch (> 8, not a multiple of 8).
    xb = jax.random.normal(jax.random.PRNGKey(1), (37, IN_SIZE), jnp.float32)
    outb = jax.block_until_ready(ff_forward(xb, w_packed, b_packed))
    refb = ff_reference(xb, params)
    assert outb.shape == (37, OUT)
    assert jnp.allclose(outb, refb, atol=1e-5, rtol=1e-5), (outb, refb)

    print("KERNEL_OK")
</pallas_src>

<mosaic_0001>
module attributes {stable_mosaic.version = 11 : i64} {
  func.func @ff_kernel(%arg0: i32, %arg1: memref<8x8xf32, #tpu.memory_space<vmem>>, %arg2: memref<24x128xf32, #tpu.memory_space<vmem>>, %arg3: memref<8x128xf32, #tpu.memory_space<vmem>>, %arg4: memref<8x128xf32, #tpu.memory_space<vmem>>) attributes {dimension_semantics = [#tpu.dimension_semantics<parallel>], iteration_bounds = array<i64: 1>, scalar_prefetch = 0 : i64, scratch_operands = 0 : i64, tpu.core_type = #tpu.core_type<tc>, window_params = [{transform_indices = @transform_0, window_bounds = array<i64: 8, 8>}, {pipeline_mode = #tpu.pipeline_mode<synchronous>, transform_indices = @transform_1, window_bounds = array<i64: 24, 128>}, {pipeline_mode = #tpu.pipeline_mode<synchronous>, transform_indices = @transform_2, window_bounds = array<i64: 8, 128>}, {transform_indices = @transform_3, window_bounds = array<i64: 8, 128>}]} {
    %c0 = arith.constant 0 : index
    %c0_0 = arith.constant 0 : index
    %0 = vector.load %arg1[%c0, %c0_0] : memref<8x8xf32, #tpu.memory_space<vmem>>, vector<8x8xf32>
    %c0_1 = arith.constant 0 : index
    %c0_2 = arith.constant 0 : index
    %1 = vector.load %arg3[%c0_1, %c0_2] : memref<8x128xf32, #tpu.memory_space<vmem>>, vector<8x128xf32>
    %c0_3 = arith.constant 0 : index
    %c0_4 = arith.constant 0 : index
    %2 = vector.load %arg2[%c0_3, %c0_4] : memref<24x128xf32, #tpu.memory_space<vmem>>, vector<8x128xf32>
    %cst = arith.constant dense<0.000000e+00> : vector<8x128xf32>
    %3 = tpu.matmul %0, %2, %cst {dimension_numbers = #tpu.dot_dimension_numbers<[1], [0], [0], [1], [0, 0, 1, 1], [], []>} : vector<8x8xf32>, vector<8x128xf32>, vector<8x128xf32> -> vector<8x128xf32>
    %4 = vector.extract_strided_slice %1 {offsets = [0, 0], sizes = [1, 128], strides = [1, 1]} : vector<8x128xf32> to vector<1x128xf32>
    %5 = vector.broadcast %4 : vector<1x128xf32> to vector<8x128xf32>
    %6 = arith.addf %3, %5 : vector<8x128xf32>
    %cst_5 = arith.constant 0.000000e+00 : f32
    %7 = vector.broadcast %cst_5 : f32 to vector<8x128xf32>
    %8 = arith.maximumf %6, %7 : vector<8x128xf32>
    %c8 = arith.constant 8 : index
    %c0_6 = arith.constant 0 : index
    %9 = vector.load %arg2[%c8, %c0_6] : memref<24x128xf32, #tpu.memory_space<vmem>>, vector<8x128xf32>
    %10 = vector.extract_strided_slice %8 {offsets = [0, 0], sizes = [8, 8], strides = [1, 1]} : vector<8x128xf32> to vector<8x8xf32>
    %cst_7 = arith.constant dense<0.000000e+00> : vector<8x128xf32>
    %11 = tpu.matmul %10, %9, %cst_7 {dimension_numbers = #tpu.dot_dimension_numbers<[1], [0], [0], [1], [0, 0, 1, 1], [], []>} : vector<8x8xf32>, vector<8x128xf32>, vector<8x128xf32> -> vector<8x128xf32>
    %12 = vector.extract_strided_slice %1 {offsets = [1, 0], sizes = [1, 128], strides = [1, 1]} : vector<8x128xf32> to vector<1x128xf32>
    %13 = vector.broadcast %12 : vector<1x128xf32> to vector<8x128xf32>
    %14 = arith.addf %11, %13 : vector<8x128xf32>
    %cst_8 = arith.constant 0.000000e+00 : f32
    %15 = vector.broadcast %cst_8 : f32 to vector<8x128xf32>
    %16 = arith.maximumf %14, %15 : vector<8x128xf32>
    %c16 = arith.constant 16 : index
    %c0_9 = arith.constant 0 : index
    %17 = vector.load %arg2[%c16, %c0_9] : memref<24x128xf32, #tpu.memory_space<vmem>>, vector<8x128xf32>
    %18 = vector.extract_strided_slice %16 {offsets = [0, 0], sizes = [8, 8], strides = [1, 1]} : vector<8x128xf32> to vector<8x8xf32>
    %cst_10 = arith.constant dense<0.000000e+00> : vector<8x128xf32>
    %19 = tpu.matmul %18, %17, %cst_10 {dimension_numbers = #tpu.dot_dimension_numbers<[1], [0], [0], [1], [0, 0, 1, 1], [], []>} : vector<8x8xf32>, vector<8x128xf32>, vector<8x128xf32> -> vector<8x128xf32>
    %20 = vector.extract_strided_slice %1 {offsets = [2, 0], sizes = [1, 128], strides = [1, 1]} : vector<8x128xf32> to vector<1x128xf32>
    %21 = vector.broadcast %20 : vector<1x128xf32> to vector<8x128xf32>
    %22 = arith.addf %19, %21 : vector<8x128xf32>
    %23 = arith.negf %22 : vector<8x128xf32>
    %24 = math.exp %23 : vector<8x128xf32>
    %cst_11 = arith.constant 1.000000e+00 : f32
    %25 = vector.broadcast %cst_11 : f32 to vector<8x128xf32>
    %26 = arith.addf %25, %24 : vector<8x128xf32>
    %27 = arith.divf %25, %26 : vector<8x128xf32>
    %c0_12 = arith.constant 0 : index
    %c0_13 = arith.constant 0 : index
    %28 = vector.load %arg4[%c0_12, %c0_13] : memref<8x128xf32, #tpu.memory_space<vmem>>, vector<8x128xf32>
    tpu.vector_store %arg4[%c0_12, %c0_13], %27 {strides = array<i32>} : memref<8x128xf32, #tpu.memory_space<vmem>>, vector<8x128xf32>,
    return
  }
  func.func @transform_0(%arg0: i32) -> (i32, i32) {
    %c0_i32 = arith.constant 0 : i32
    %c0_i32_0 = arith.constant 0 : i32
    return %arg0, %c0_i32 : i32, i32
  }
  func.func @transform_1(%arg0: i32) -> (i32, i32) {
    %c0_i32 = arith.constant 0 : i32
    %c0_i32_0 = arith.constant 0 : i32
    %c0_i32_1 = arith.constant 0 : i32
    return %c0_i32, %c0_i32_0 : i32, i32
  }
  func.func @transform_2(%arg0: i32) -> (i32, i32) {
    %c0_i32 = arith.constant 0 : i32
    %c0_i32_0 = arith.constant 0 : i32
    %c0_i32_1 = arith.constant 0 : i32
    return %c0_i32, %c0_i32_0 : i32, i32
  }
  func.func @transform_3(%arg0: i32) -> (i32, i32) {
    %c0_i32 = arith.constant 0 : i32
    %c0_i32_0 = arith.constant 0 : i32
    return %arg0, %c0_i32 : i32, i32
  }
}

</mosaic_0001>

<llo_original>
// kernel: ff_forward.1
$region0: #{ff_forward.1}
  #allocation0 [shape = 'u32[]', space=smem, size = 0x4, offset = 0x4, fixed_abs, tag = 'smem constant byte address 0x4 - core index']
  #allocation1 [shape = 'u32[144,128]{1,0:T(1,128)}', space=vmem, size = 0x12000, scoped, tag = 'internal scratch']
  %s0 = inlined_call_operand.vmem [shape: f32[8,8], index: 0, kind: input, shape index: {}]
  %s1 = inlined_call_operand.hbm [shape: f32[24,128], index: 1, kind: input, shape index: {}]
  %s2 = inlined_call_operand.vmem [shape: f32[8,128], index: 2, kind: input, shape index: {}]
  %s3 = inlined_call_operand.vmem [shape: f32[8,128], index: 3, kind: output, shape index: {}]
  %s4 = sld [smem:[#allocation0]]
  $region26: #{ff_forward.1} parent=0
    _
  %s6 = ssub.s32 1, %s4
  %s7 = scalar_select 0, %s6, %s4
  $region1: #{ff_forward.1} parent=0
    #allocation2 [shape = 'u8[12288]{0}', space=vmem, size = 0x3000, scoped, tag = 'input window, operand 1, single buffered']
    #allocation3 [shape = 's32[1]{0}', space=sflag, size = 0x4, scoped, tag = 'scoped memory for ff_forward.1']
    %8 = vsyncpa [#allocation3], 0
    // Predicated region
    $region2: #{ff_forward.1} parent=1 // pred_check
      _
    $region3: #{ff_forward.1} parent=1 // pred_check_branch
      %10 = sbr.rel (0) target = $region5
    $region4: #{ff_forward.1} parent=1 // pred_region
      _
    $region5: #{ff_forward.1} parent=1 // pred_fallthru
      _
    // Predicated region
    $region6: #{ff_forward.1} parent=1 // pred_check
      _
    $region7: #{ff_forward.1} parent=1 // pred_check_branch
      %12 = sbr.rel (0) target = $region9
    $region8: #{ff_forward.1} parent=1 // pred_region
      %s14 = ssub.s32 384, 384
      %15 = vsyncadd [#allocation3], %s14
      %s16 = sshll.u32 [#allocation2], 4
      %s17 = int_to_ptr.vmem [resolvable:$true] %s16
      %22 = dma.hbm_to_vmem [thread:$0]  %s1, 384, %s17, [#allocation3], 128, 128, 8
    $region9: #{ff_forward.1} parent=1 // pred_fallthru
      _
    // Predicated region
    $region10: #{ff_forward.1} parent=1 // pred_check
      _
    $region11: #{ff_forward.1} parent=1 // pred_check_branch
      %24 = sbr.rel (0) target = $region13
    $region12: #{ff_forward.1} parent=1 // pred_region
      _
    $region13: #{ff_forward.1} parent=1 // pred_fallthru
      _
    // Predicated region
    $region14: #{ff_forward.1} parent=1 // pred_check
      _
    $region15: #{ff_forward.1} parent=1 // pred_check_branch
      %26 = sbr.rel (0) target = $region17
    $region16: #{ff_forward.1} parent=1 // pred_region
      %27 = dma.done [#allocation3], 384
    $region17: #{ff_forward.1} parent=1 // pred_fallthru
      _
    %v28 = vld [vmem:[%s0] sm:$0xff]
    %v29 = vld [vmem:[%s2] sm:$0xff]
    %v30 = vld [vmem:[#allocation2] sm:$0xff]
    %v31 = vlaneseq
    %v32 = vshrl.u32 %v31, 7
    %v33 = vsub.s32 0, %v32
    %v34 = vrot.slane %v29, %v33
    %vm35 = vcmask 64512
    %v37 = vsel %vm35, %v28, 0
    %39 = vmatprep.subr.mxu0 0.0
    %40 = vmatpush1.msra.mxu0 %v30
    %41 = vmatprep.subr.mxu0 0.0
    %42 = vmatpush1.msra.mxu0 0.0
    %43 = vmatprep.subr.mxu0 0.0
    %44 = vmatpush1.msra.mxu0 0.0
    %45 = vmatprep.subr.mxu0 0.0
    %46 = vmatpush1.msra.mxu0 0.0
    %47 = vmatprep.subr.mxu0 0.0
    %48 = vmatpush1.msra.mxu0 0.0
    %49 = vmatprep.subr.mxu0 0.0
    %50 = vmatpush1.msra.mxu0 0.0
    %51 = vmatprep.subr.mxu0 0.0
    %52 = vmatpush1.msra.mxu0 0.0
    %53 = vmatprep.subr.mxu0 0.0
    %54 = vmatpush1.msra.mxu0 0.0
    %55 = vmatprep.subr.mxu0 0.0
    %56 = vmatpush1.msra.mxu0 0.0
    %57 = vmatprep.subr.mxu0 0.0
    %58 = vmatpush1.msra.mxu0 0.0
    %59 = vmatprep.subr.mxu0 0.0
    %60 = vmatpush1.msra.mxu0 0.0
    %61 = vmatprep.subr.mxu0 0.0
    %62 = vmatpush1.msra.mxu0 0.0
    %63 = vmatprep.subr.mxu0 0.0
    %64 = vmatpush1.msra.mxu0 0.0
    %65 = vmatprep.subr.mxu0 0.0
    %66 = vmatpush1.msra.mxu0 0.0
    %67 = vmatprep.subr.mxu0 0.0
    %68 = vmatpush1.msra.mxu0 0.0
    %69 = vmatprep.subr.mxu0 0.0
    %70 = vmatpush1.msra.mxu0 0.0
    %71 = vmatprep.subr.mxu0 0.0
    %72 = vmatpush1.msra.mxu0 0.0
    %73 = vmatprep.subr.mxu0 0.0
    %74 = vmatpush1.msra.mxu0 0.0
    %75 = vmatprep.subr.mxu0 0.0
    %76 = vmatpush1.msra.mxu0 0.0
    %77 = vmatprep.subr.mxu0 0.0
    %78 = vmatpush1.msra.mxu0 0.0
    %79 = vmatprep.subr.mxu0 0.0
    %80 = vmatpush1.msra.mxu0 0.0
    %81 = vmatprep.subr.mxu0 0.0
    %82 = vmatpush1.msra.mxu0 0.0
    %83 = vmatprep.subr.mxu0 0.0
    %84 = vmatpush1.msra.mxu0 0.0
    %85 = vmatprep.subr.mxu0 0.0
    %86 = vmatpush1.msra.mxu0 0.0
    %87 = vmatprep.subr.mxu0 0.0
    %88 = vmatpush1.msra.mxu0 0.0
    %89 = vmatprep.subr.mxu0 0.0
    %90 = vmatpush1.msra.mxu0 0.0
    %91 = vmatprep.subr.mxu0 0.0
    %92 = vmatpush1.msra.mxu0 0.0
    %93 = vmatprep.subr.mxu0 0.0
    %94 = vmatpush1.msra.mxu0 0.0
    %95 = vmatprep.subr.mxu0 0.0
    %96 = vmatpush1.msra.mxu0 0.0
    %97 = vmatprep.subr.mxu0 0.0
    %98 = vmatpush1.msra.mxu0 0.0
    %99 = vmatprep.subr.mxu0 0.0
    %100 = vmatpush1.msra.mxu0 0.0
    %101 = vmatprep.subr.mxu0 0.0
    %102 = vmatpush1.msra.mxu0 0.0
    %103 = vmatprep.mubr.f32.mxu0 0.0
    %104 = vmatmul.mubr.f32.gmra.mrb[0].mxu0 %v37
    %v105 = vpop.f32.mrb[0].mxu0
    %v106 = vadd.f32 %v34, %v105
    %v107 = vpop.f32.mrb[0].mxu0
    %108 = vdwg.mxu0
    %v109 = vmax.f32 %v106, 0.0
    %v110 = vld [vmem:[#allocation2 + $0x8] sm:$0xff]
    %v111 = vlaneseq
    %v112 = vshrl.u32 %v111, 7
    %v113 = vsub.s32 1, %v112
    %v114 = vrot.slane %v29, %v113
    %v116 = vsel %vm35, %v109, 0
    %118 = vmatprep.subr.mxu0 0.0
    %119 = vmatpush1.msra.mxu0 %v110
    %120 = vmatprep.subr.mxu0 0.0
    %121 = vmatpush1.msra.mxu0 0.0
    %122 = vmatprep.subr.mxu0 0.0
    %123 = vmatpush1.msra.mxu0 0.0
    %124 = vmatprep.subr.mxu0 0.0
    %125 = vmatpush1.msra.mxu0 0.0
    %126 = vmatprep.subr.mxu0 0.0
    %127 = vmatpush1.msra.mxu0 0.0
    %128 = vmatprep.subr.mxu0 0.0
    %129 = vmatpush1.msra.mxu0 0.0
    %130 = vmatprep.subr.mxu0 0.0
    %131 = vmatpush1.msra.mxu0 0.0
    %132 = vmatprep.subr.mxu0 0.0
    %133 = vmatpush1.msra.mxu0 0.0
    %134 = vmatprep.subr.mxu0 0.0
    %135 = vmatpush1.msra.mxu0 0.0
    %136 = vmatprep.subr.mxu0 0.0
    %137 = vmatpush1.msra.mxu0 0.0
    %138 = vmatprep.subr.mxu0 0.0
    %139 = vmatpush1.msra.mxu0 0.0
    %140 = vmatprep.subr.mxu0 0.0
    %141 = vmatpush1.msra.mxu0 0.0
    %142 = vmatprep.subr.mxu0 0.0
    %143 = vmatpush1.msra.mxu0 0.0
    %144 = vmatprep.subr.mxu0 0.0
    %145 = vmatpush1.msra.mxu0 0.0
    %146 = vmatprep.subr.mxu0 0.0
    %147 = vmatpush1.msra.mxu0 0.0
    %148 = vmatprep.subr.mxu0 0.0
    %149 = vmatpush1.msra.mxu0 0.0
    %150 = vmatprep.subr.mxu0 0.0
    %151 = vmatpush1.msra.mxu0 0.0
    %152 = vmatprep.subr.mxu0 0.0
    %153 = vmatpush1.msra.mxu0 0.0
    %154 = vmatprep.subr.mxu0 0.0
    %155 = vmatpush1.msra.mxu0 0.0
    %156 = vmatprep.subr.mxu0 0.0
    %157 = vmatpush1.msra.mxu0 0.0
    %158 = vmatprep.subr.mxu0 0.0
    %159 = vmatpush1.msra.mxu0 0.0
    %160 = vmatprep.subr.mxu0 0.0
    %161 = vmatpush1.msra.mxu0 0.0
    %162 = vmatprep.subr.mxu0 0.0
    %163 = vmatpush1.msra.mxu0 0.0
    %164 = vmatprep.subr.mxu0 0.0
    %165 = vmatpush1.msra.mxu0 0.0
    %166 = vmatprep.subr.mxu0 0.0
    %167 = vmatpush1.msra.mxu0 0.0
    %168 = vmatprep.subr.mxu0 0.0
    %169 = vmatpush1.msra.mxu0 0.0
    %170 = vmatprep.subr.mxu0 0.0
    %171 = vmatpush1.msra.mxu0 0.0
    %172 = vmatprep.subr.mxu0 0.0
    %173 = vmatpush1.msra.mxu0 0.0
    %174 = vmatprep.subr.mxu0 0.0
    %175 = vmatpush1.msra.mxu0 0.0
    %176 = vmatprep.subr.mxu0 0.0
    %177 = vmatpush1.msra.mxu0 0.0
    %178 = vmatprep.subr.mxu0 0.0
    %179 = vmatpush1.msra.mxu0 0.0
    %180 = vmatprep.subr.mxu0 0.0
    %181 = vmatpush1.msra.mxu0 0.0
    %182 = vmatprep.mubr.f32.mxu0 0.0
    %183 = vmatmul.mubr.f32.gmra.mrb[0].mxu0 %v116
    %v184 = vpop.f32.mrb[0].mxu0
    %v185 = vadd.f32 %v114, %v184
    %v186 = vpop.f32.mrb[0].mxu0
    %187 = vdwg.mxu0
    %v188 = vmax.f32 %v185, 0.0
    %v189 = vld [vmem:[#allocation2 + $0x10] sm:$0xff]
    %v190 = vlaneseq
    %v191 = vshrl.u32 %v190, 7
    %v192 = vsub.s32 2, %v191
    %v193 = vrot.slane %v29, %v192
    %v195 = vsel %vm35, %v188, 0
    %197 = vmatprep.subr.mxu0 0.0
    %198 = vmatpush1.msra.mxu0 %v189
    %199 = vmatprep.subr.mxu0 0.0
    %200 = vmatpush1.msra.mxu0 0.0
    %201 = vmatprep.subr.mxu0 0.0
    %202 = vmatpush1.msra.mxu0 0.0
    %203 = vmatprep.subr.mxu0 0.0
    %204 = vmatpush1.msra.mxu0 0.0
    %205 = vmatprep.subr.mxu0 0.0
    %206 = vmatpush1.msra.mxu0 0.0
    %207 = vmatprep.subr.mxu0 0.0
    %208 = vmatpush1.msra.mxu0 0.0
    %209 = vmatprep.subr.mxu0 0.0
    %210 = vmatpush1.msra.mxu0 0.0
    %211 = vmatprep.subr.mxu0 0.0
    %212 = vmatpush1.msra.mxu0 0.0
    %213 = vmatprep.subr.mxu0 0.0
    %214 = vmatpush1.msra.mxu0 0.0
    %215 = vmatprep.subr.mxu0 0.0
    %216 = vmatpush1.msra.mxu0 0.0
    %217 = vmatprep.subr.mxu0 0.0
    %218 = vmatpush1.msra.mxu0 0.0
    %219 = vmatprep.subr.mxu0 0.0
    %220 = vmatpush1.msra.mxu0 0.0
    %221 = vmatprep.subr.mxu0 0.0
    %222 = vmatpush1.msra.mxu0 0.0
    %223 = vmatprep.subr.mxu0 0.0
    %224 = vmatpush1.msra.mxu0 0.0
    %225 = vmatprep.subr.mxu0 0.0
    %226 = vmatpush1.msra.mxu0 0.0
    %227 = vmatprep.subr.mxu0 0.0
    %228 = vmatpush1.msra.mxu0 0.0
    %229 = vmatprep.subr.mxu0 0.0
    %230 = vmatpush1.msra.mxu0 0.0
    %231 = vmatprep.subr.mxu0 0.0
    %232 = vmatpush1.msra.mxu0 0.0
    %233 = vmatprep.subr.mxu0 0.0
    %234 = vmatpush1.msra.mxu0 0.0
    %235 = vmatprep.subr.mxu0 0.0
    %236 = vmatpush1.msra.mxu0 0.0
    %237 = vmatprep.subr.mxu0 0.0
    %238 = vmatpush1.msra.mxu0 0.0
    %239 = vmatprep.subr.mxu0 0.0
    %240 = vmatpush1.msra.mxu0 0.0
    %241 = vmatprep.subr.mxu0 0.0
    %242 = vmatpush1.msra.mxu0 0.0
    %243 = vmatprep.subr.mxu0 0.0
    %244 = vmatpush1.msra.mxu0 0.0
    %245 = vmatprep.subr.mxu0 0.0
    %246 = vmatpush1.msra.mxu0 0.0
    %247 = vmatprep.subr.mxu0 0.0
    %248 = vmatpush1.msra.mxu0 0.0
    %249 = vmatprep.subr.mxu0 0.0
    %250 = vmatpush1.msra.mxu0 0.0
    %251 = vmatprep.subr.mxu0 0.0
    %252 = vmatpush1.msra.mxu0 0.0
    %253 = vmatprep.subr.mxu0 0.0
    %254 = vmatpush1.msra.mxu0 0.0
    %255 = vmatprep.subr.mxu0 0.0
    %256 = vmatpush1.msra.mxu0 0.0
    %257 = vmatprep.subr.mxu0 0.0
    %258 = vmatpush1.msra.mxu0 0.0
    %259 = vmatprep.subr.mxu0 0.0
    %260 = vmatpush1.msra.mxu0 0.0
    %261 = vmatprep.mubr.f32.mxu0 0.0
    %262 = vmatmul.mubr.f32.gmra.mrb[0].mxu0 %v195
    %v263 = vpop.f32.mrb[0].mxu0
    %v264 = vadd.f32 %v193, %v263
    %v265 = vpop.f32.mrb[0].mxu0
    %266 = vdwg.mxu0
    %v267 = vxor.u32 %v264, 2147483648
    %v268 = vmul.f32 %v267, 1.442695
    %v269 = vpow.pop %v268
    %v270 = vadd.f32 %v269, 1.0
    %v271 = vrcp.pop %v270
    %v272 = vmul.f32 1.0, %v271
    %273 = vst [vmem:[%s3] sm:$0xff] %v272
    // Predicated region
    $region18: #{ff_forward.1} parent=1 // pred_check
      _
    $region19: #{ff_forward.1} parent=1 // pred_check_branch
      %275 = sbr.rel (0) target = $region21
    $region20: #{ff_forward.1} parent=1 // pred_region
      _
    $region21: #{ff_forward.1} parent=1 // pred_fallthru
      _
    // Predicated region
    $region22: #{ff_forward.1} parent=1 // pred_check
      _
    $region23: #{ff_forward.1} parent=1 // pred_check_branch
      %277 = sbr.rel (0) target = $region25
    $region24: #{ff_forward.1} parent=1 // pred_region
      _
    $region25: #{ff_forward.1} parent=1 // pred_fallthru
      _
    %278 = vsyncpa [#allocation3], 1

</llo_original>
